<compile_context>
chip_gen: v6e
topology: v6e:2x2x1
jax: 0.10.0
libtpu: 0.0.40
codegen_flags: <defaults>
</compile_context>

<pallas_src>
import functools

import jax
import jax.numpy as jnp
from jax.experimental import pallas as pl
from jax.experimental.pallas import tpu as pltpu

_LANES = 128
_CHUNK_ROWS = 64  # multiple of the packed sublane tile for f32(8)/bf16(16)/int8(32)


def _ceil_div(a, b):
    return -(-a // b)


def _target_block_rows(itemsize: int) -> int:
    """~8 MiB per input per grid step on v7x (fast HBM, small VMEM), ~4 MiB else."""
    try:
        kind = jax.devices()[0].device_kind.lower()
    except Exception:  # pragma: no cover - device query is best-effort only
        kind = ""
    target_bytes = 8 * 1024 * 1024 if "v7" in kind else 4 * 1024 * 1024
    return max(_CHUNK_ROWS, target_bytes // (_LANES * itemsize))


def _stddev_partial_kernel(yp_ref, yt_ref, sum_ref, sq_ref, *, br, cr, rows,
                           needs_mask):
    """Per-grid-step partial sum / sum-of-squares of (y_pred - y_true).

    yp_ref, yt_ref : (br, 128) input blocks (last grid block may be partial).
    sum_ref, sq_ref: (1, 8, 128) per-step partial outputs (f32).
    Statics: br = block rows, cr = chunk rows, rows = valid rows in the array,
    needs_mask = whether the last grid block extends past `rows`.
    """
    k = pl.program_id(0)
    base = k * br
    if needs_mask:
        row_iota = jax.lax.broadcasted_iota(jnp.int32, (cr, 1), 0)

    def body(c, carry):
        s_acc, q_acc = carry
        off = pl.multiple_of(c * cr, cr)
        # Upcast before subtracting (better bf16/f16 precision, same HBM bytes).
        yp = yp_ref[pl.ds(off, cr), :].astype(jnp.float32)
        yt = yt_ref[pl.ds(off, cr), :].astype(jnp.float32)
        d = yp - yt
        if needs_mask:
            # Zero out garbage rows of the partial last grid block.  select()
            # also kills any NaN/Inf read from the un-DMA'd VMEM region.
            d = jnp.where(base + off + row_iota < rows, d, 0.0)
        # Reduce (cr,128) -> (8,128) with vreg-aligned static slices: pure VPU
        # adds, no cross-lane XLU work and no VMEM temporaries.
        for r in range(cr // 8):
            blk = d[r * 8:(r + 1) * 8, :]
            s_acc = s_acc + blk
            q_acc = q_acc + blk * blk
        return s_acc, q_acc

    zero = jnp.zeros((8, _LANES), jnp.float32)
    s_acc, q_acc = jax.lax.fori_loop(0, br // cr, body, (zero, zero))
    sum_ref[...] = s_acc[None]
    sq_ref[...] = q_acc[None]


def std_dev_loss(y_pred: jax.Array, y_true: jax.Array, *,
                 min_pallas_elements: int = 1 << 21) -> jax.Array:
    """Pallas implementation of StdDevLoss.forward (unbiased std of the diff)."""
    assert y_pred.shape == y_true.shape, (y_pred.shape, y_true.shape)

    out_dtype = jnp.result_type(y_pred.dtype, y_true.dtype)
    if not jnp.issubdtype(out_dtype, jnp.floating):
        out_dtype = jnp.float32
    total = int(y_pred.size)

    # Small-input fast path: a pallas_call launch + epilogue HLOs would dominate.
    # Also covers n < 2 (torch.std returns nan there; so does jnp.std ddof=1).
    if total < max(2, min_pallas_elements):
        d = y_pred.astype(jnp.float32) - y_true.astype(jnp.float32)
        return jnp.std(d, ddof=1).astype(out_dtype)

    itemsize = max(jnp.dtype(y_pred.dtype).itemsize,
                   jnp.dtype(y_true.dtype).itemsize)
    cr = _CHUNK_ROWS

    rows = max(_ceil_div(total, _LANES), cr)
    padded_total = rows * _LANES

    yp = y_pred.reshape(-1)
    yt = y_true.reshape(-1)
    if padded_total != total:
        # Only lane-misaligned or tiny inputs hit this copy; padded positions
        # give diff == 0 so they contribute nothing to the sums.
        # TODO(synk): fully zero-copy ragged handling needs manual 1-D DMA from
        # a pl.ANY ref; not worth the lowering risk here.
        pad = padded_total - total
        yp = jnp.pad(yp, (0, pad))
        yt = jnp.pad(yt, (0, pad))
    yp2 = yp.reshape(rows, _LANES)
    yt2 = yt.reshape(rows, _LANES)

    br = max(cr, (min(_target_block_rows(itemsize), rows) // cr) * cr)
    k_steps = _ceil_div(rows, br)
    needs_mask = (rows % br) != 0

    # VMEM: 2 inputs x 2 pipeline buffers x block + slack (chunks/accumulators
    # live in vregs).  Stays well under v7x's 64 MiB physical VMEM.
    block_bytes = br * _LANES * itemsize
    vmem_limit = int(min(48 * 1024 * 1024,
                         max(16 * 1024 * 1024, 4 * block_bytes + 4 * 1024 * 1024)))

    kernel = functools.partial(_stddev_partial_kernel, br=br, cr=cr, rows=rows,
                               needs_mask=needs_mask)
    part_shape = jax.ShapeDtypeStruct((k_steps, 8, _LANES), jnp.float32)

    sum_part, sq_part = pl.pallas_call(
        kernel,
        out_shape=(part_shape, part_shape),
        grid_spec=pltpu.PrefetchScalarGridSpec(
            num_scalar_prefetch=0,
            grid=(k_steps,),
            in_specs=[
                pl.BlockSpec((br, _LANES), lambda k: (k, 0)),
                pl.BlockSpec((br, _LANES), lambda k: (k, 0)),
            ],
            out_specs=(
                pl.BlockSpec((1, 8, _LANES), lambda k: (k, 0, 0)),
                pl.BlockSpec((1, 8, _LANES), lambda k: (k, 0, 0)),
            ),
        ),
        compiler_params=pltpu.CompilerParams(
            dimension_semantics=("parallel",),
            vmem_limit_bytes=vmem_limit,
        ),
    )(yp2, yt2)

    # Tiny epilogue: one cross-lane reduce over the (k_steps,8,128) partials.
    n = jnp.float32(total)
    s = jnp.sum(sum_part)
    ss = jnp.sum(sq_part)
    mean = s / n
    var = (ss - n * mean * mean) / (n - 1.0)
    var = jnp.maximum(var, 0.0)  # guard tiny negative from rounding
    return jnp.sqrt(var).astype(out_dtype)


if __name__ == "__main__":
    key = jax.random.PRNGKey(0)
    k1, k2, k3, k4 = jax.random.split(key, 4)

    forced = jax.jit(functools.partial(std_dev_loss, min_pallas_elements=0))

    # 1) Module-consistent small shape (B,C,H,W); force the Pallas path.
    shape = (2, 4, 16, 16)
    y_pred = jax.random.normal(k1, shape, dtype=jnp.float32)
    y_true = jax.random.normal(k2, shape, dtype=jnp.float32)
    loss = forced(y_pred, y_true)
    jax.block_until_ready(loss)
    ref = jnp.std(y_pred - y_true, ddof=1)
    assert jnp.allclose(loss, ref, rtol=1e-5, atol=1e-5), (loss, ref)

    # 2) Multi-block grid with a partial (masked) last block, zero-copy path.
    shape2 = (3, 5, 40, 64)  # 38400 elems = 300 rows of 128
    y_pred2 = jax.random.normal(k3, shape2, dtype=jnp.float32)
    y_true2 = jax.random.normal(k4, shape2, dtype=jnp.float32)
    loss2 = forced(y_pred2, y_true2)
    jax.block_until_ready(loss2)
    ref2 = jnp.std(y_pred2 - y_true2, ddof=1)
    assert jnp.allclose(loss2, ref2, rtol=1e-5, atol=1e-5), (loss2, ref2)

    # 3) Default small-input fast path (no Pallas) still matches.
    loss3 = jax.jit(std_dev_loss)(y_pred, y_true)
    jax.block_until_ready(loss3)
    assert jnp.allclose(loss3, ref, rtol=1e-5, atol=1e-5), (loss3, ref)

    print("KERNEL_OK")
</pallas_src>

<mosaic_0001>
module attributes {stable_mosaic.version = 11 : i64} {
  func.func @_stddev_partial_kernel(%arg0: i32, %arg1: memref<64x128xf32, #tpu.memory_space<vmem>>, %arg2: memref<64x128xf32, #tpu.memory_space<vmem>>, %arg3: memref<1x8x128xf32, #tpu.memory_space<vmem>>, %arg4: memref<1x8x128xf32, #tpu.memory_space<vmem>>) attributes {dimension_semantics = [#tpu.dimension_semantics<parallel>], iteration_bounds = array<i64: 1>, scalar_prefetch = 0 : i64, scratch_operands = 0 : i64, tpu.core_type = #tpu.core_type<tc>, window_params = [{transform_indices = @transform_0, window_bounds = array<i64: 64, 128>}, {transform_indices = @transform_1, window_bounds = array<i64: 64, 128>}, {transform_indices = @transform_2, window_bounds = array<i64: 1, 8, 128>}, {transform_indices = @transform_3, window_bounds = array<i64: 1, 8, 128>}]} {
    %cst = arith.constant 0.000000e+00 : f32
    %0 = vector.broadcast %cst : f32 to vector<8x128xf32>
    %c0_i32 = arith.constant 0 : i32
    %c64_i32 = arith.constant 64 : i32
    %1 = arith.muli %c0_i32, %c64_i32 : i32
    %2 = tpu.assume_multiple %1, 64 : i32
    %3 = arith.index_cast %2 : i32 to index
    %c0 = arith.constant 0 : index
    %4 = vector.load %arg1[%3, %c0] : memref<64x128xf32, #tpu.memory_space<vmem>>, vector<64x128xf32>
    %5 = arith.index_cast %2 : i32 to index
    %c0_0 = arith.constant 0 : index
    %6 = vector.load %arg2[%5, %c0_0] : memref<64x128xf32, #tpu.memory_space<vmem>>, vector<64x128xf32>
    %7 = arith.subf %4, %6 : vector<64x128xf32>
    %8 = vector.extract_strided_slice %7 {offsets = [0, 0], sizes = [8, 128], strides = [1, 1]} : vector<64x128xf32> to vector<8x128xf32>
    %9 = arith.addf %0, %8 : vector<8x128xf32>
    %10 = arith.mulf %8, %8 : vector<8x128xf32>
    %11 = arith.addf %0, %10 : vector<8x128xf32>
    %12 = vector.extract_strided_slice %7 {offsets = [8, 0], sizes = [8, 128], strides = [1, 1]} : vector<64x128xf32> to vector<8x128xf32>
    %13 = arith.addf %9, %12 : vector<8x128xf32>
    %14 = arith.mulf %12, %12 : vector<8x128xf32>
    %15 = arith.addf %11, %14 : vector<8x128xf32>
    %16 = vector.extract_strided_slice %7 {offsets = [16, 0], sizes = [8, 128], strides = [1, 1]} : vector<64x128xf32> to vector<8x128xf32>
    %17 = arith.addf %13, %16 : vector<8x128xf32>
    %18 = arith.mulf %16, %16 : vector<8x128xf32>
    %19 = arith.addf %15, %18 : vector<8x128xf32>
    %20 = vector.extract_strided_slice %7 {offsets = [24, 0], sizes = [8, 128], strides = [1, 1]} : vector<64x128xf32> to vector<8x128xf32>
    %21 = arith.addf %17, %20 : vector<8x128xf32>
    %22 = arith.mulf %20, %20 : vector<8x128xf32>
    %23 = arith.addf %19, %22 : vector<8x128xf32>
    %24 = vector.extract_strided_slice %7 {offsets = [32, 0], sizes = [8, 128], strides = [1, 1]} : vector<64x128xf32> to vector<8x128xf32>
    %25 = arith.addf %21, %24 : vector<8x128xf32>
    %26 = arith.mulf %24, %24 : vector<8x128xf32>
    %27 = arith.addf %23, %26 : vector<8x128xf32>
    %28 = vector.extract_strided_slice %7 {offsets = [40, 0], sizes = [8, 128], strides = [1, 1]} : vector<64x128xf32> to vector<8x128xf32>
    %29 = arith.addf %25, %28 : vector<8x128xf32>
    %30 = arith.mulf %28, %28 : vector<8x128xf32>
    %31 = arith.addf %27, %30 : vector<8x128xf32>
    %32 = vector.extract_strided_slice %7 {offsets = [48, 0], sizes = [8, 128], strides = [1, 1]} : vector<64x128xf32> to vector<8x128xf32>
    %33 = arith.addf %29, %32 : vector<8x128xf32>
    %34 = arith.mulf %32, %32 : vector<8x128xf32>
    %35 = arith.addf %31, %34 : vector<8x128xf32>
    %36 = vector.extract_strided_slice %7 {offsets = [56, 0], sizes = [8, 128], strides = [1, 1]} : vector<64x128xf32> to vector<8x128xf32>
    %37 = arith.addf %33, %36 : vector<8x128xf32>
    %38 = arith.mulf %36, %36 : vector<8x128xf32>
    %39 = arith.addf %35, %38 : vector<8x128xf32>
    %c1_i32 = arith.constant 1 : i32
    %40 = vector.shape_cast %37 : vector<8x128xf32> to vector<1x8x128xf32>
    %c0_1 = arith.constant 0 : index
    %c0_2 = arith.constant 0 : index
    %c0_3 = arith.constant 0 : index
    %41 = vector.load %arg3[%c0_1, %c0_2, %c0_3] : memref<1x8x128xf32, #tpu.memory_space<vmem>>, vector<1x8x128xf32>
    tpu.vector_store %arg3[%c0_1, %c0_2, %c0_3], %40 {strides = array<i32>} : memref<1x8x128xf32, #tpu.memory_space<vmem>>, vector<1x8x128xf32>,
    %42 = vector.shape_cast %39 : vector<8x128xf32> to vector<1x8x128xf32>
    %c0_4 = arith.constant 0 : index
    %c0_5 = arith.constant 0 : index
    %c0_6 = arith.constant 0 : index
    %43 = vector.load %arg4[%c0_4, %c0_5, %c0_6] : memref<1x8x128xf32, #tpu.memory_space<vmem>>, vector<1x8x128xf32>
    tpu.vector_store %arg4[%c0_4, %c0_5, %c0_6], %42 {strides = array<i32>} : memref<1x8x128xf32, #tpu.memory_space<vmem>>, vector<1x8x128xf32>,
    return
  }
  func.func @transform_0(%arg0: i32) -> (i32, i32) {
    %c0_i32 = arith.constant 0 : i32
    %c0_i32_0 = arith.constant 0 : i32
    return %arg0, %c0_i32 : i32, i32
  }
  func.func @transform_1(%arg0: i32) -> (i32, i32) {
    %c0_i32 = arith.constant 0 : i32
    %c0_i32_0 = arith.constant 0 : i32
    return %arg0, %c0_i32 : i32, i32
  }
  func.func @transform_2(%arg0: i32) -> (i32, i32, i32) {
    %c0_i32 = arith.constant 0 : i32
    %c0_i32_0 = arith.constant 0 : i32
    %c0_i32_1 = arith.constant 0 : i32
    return %arg0, %c0_i32, %c0_i32_0 : i32, i32, i32
  }
  func.func @transform_3(%arg0: i32) -> (i32, i32, i32) {
    %c0_i32 = arith.constant 0 : i32
    %c0_i32_0 = arith.constant 0 : i32
    %c0_i32_1 = arith.constant 0 : i32
    return %arg0, %c0_i32, %c0_i32_0 : i32, i32, i32
  }
}

</mosaic_0001>

<llo_original>
// kernel: std_dev_loss.1
$region0: #{std_dev_loss.1}
  #allocation0 [shape = 'u32[]', space=smem, size = 0x4, offset = 0x4, fixed_abs, tag = 'smem constant byte address 0x4 - core index']
  #allocation1 [shape = 'u32[144,128]{1,0:T(1,128)}', space=vmem, size = 0x12000, scoped, tag = 'internal scratch']
  %s0 = inlined_call_operand.vmem [shape: f32[64,128], index: 0, kind: input, shape index: {}]
  %s1 = inlined_call_operand.vmem [shape: f32[64,128], index: 1, kind: input, shape index: {}]
  %s2 = inlined_call_operand.vmem [shape: f32[1,8,128], index: 2, kind: output, shape index: {0}]
  %s3 = inlined_call_operand.vmem [shape: f32[1,8,128], index: 3, kind: output, shape index: {1}]
  %4 = xla_tuple %s2, %s3
  %s5 = sld [smem:[#allocation0]]
  $region26: #{std_dev_loss.1} parent=0
    _
  %s7 = ssub.s32 1, %s5
  %s8 = scalar_select 0, %s7, %s5
  // Predicated region
  $region2: #{std_dev_loss.1} parent=0 // pred_check
    _
  $region3: #{std_dev_loss.1} parent=0 // pred_check_branch
    %10 = sbr.rel (0) target = $region5
  $region4: #{std_dev_loss.1} parent=0 // pred_region
    _
  $region5: #{std_dev_loss.1} parent=0 // pred_fallthru
    _
  // Predicated region
  $region6: #{std_dev_loss.1} parent=0 // pred_check
    _
  $region7: #{std_dev_loss.1} parent=0 // pred_check_branch
    %12 = sbr.rel (0) target = $region9
  $region8: #{std_dev_loss.1} parent=0 // pred_region
    _
  $region9: #{std_dev_loss.1} parent=0 // pred_fallthru
    _
  %v13 = vld [vmem:[%s0] sm:$0xff]
  %v14 = vld [vmem:[%s0 + $0x8] sm:$0xff]
  %v15 = vld [vmem:[%s0 + $0x10] sm:$0xff]
  %v16 = vld [vmem:[%s0 + $0x18] sm:$0xff]
  %v17 = vld [vmem:[%s0 + $0x20] sm:$0xff]
  %v18 = vld [vmem:[%s0 + $0x28] sm:$0xff]
  %v19 = vld [vmem:[%s0 + $0x30] sm:$0xff]
  %v20 = vld [vmem:[%s0 + $0x38] sm:$0xff]
  %v21 = vld [vmem:[%s1] sm:$0xff]
  %v22 = vld [vmem:[%s1 + $0x8] sm:$0xff]
  %v23 = vld [vmem:[%s1 + $0x10] sm:$0xff]
  %v24 = vld [vmem:[%s1 + $0x18] sm:$0xff]
  %v25 = vld [vmem:[%s1 + $0x20] sm:$0xff]
  %v26 = vld [vmem:[%s1 + $0x28] sm:$0xff]
  %v27 = vld [vmem:[%s1 + $0x30] sm:$0xff]
  %v28 = vld [vmem:[%s1 + $0x38] sm:$0xff]
  %v29 = vsub.f32 %v13, %v21
  %v30 = vsub.f32 %v14, %v22
  %v31 = vsub.f32 %v15, %v23
  %v32 = vsub.f32 %v16, %v24
  %v33 = vsub.f32 %v17, %v25
  %v34 = vsub.f32 %v18, %v26
  %v35 = vsub.f32 %v19, %v27
  %v36 = vsub.f32 %v20, %v28
  %v37 = vadd.f32 %v29, 0.0
  %v38 = vmul.f32 %v29, %v29
  %v39 = vadd.f32 %v38, 0.0
  %v40 = vadd.f32 %v37, %v30
  %v41 = vmul.f32 %v30, %v30
  %v42 = vadd.f32 %v39, %v41
  %v43 = vadd.f32 %v40, %v31
  %v44 = vmul.f32 %v31, %v31
  %v45 = vadd.f32 %v42, %v44
  %v46 = vadd.f32 %v43, %v32
  %v47 = vmul.f32 %v32, %v32
  %v48 = vadd.f32 %v45, %v47
  %v49 = vadd.f32 %v46, %v33
  %v50 = vmul.f32 %v33, %v33
  %v51 = vadd.f32 %v48, %v50
  %v52 = vadd.f32 %v49, %v34
  %v53 = vmul.f32 %v34, %v34
  %v54 = vadd.f32 %v51, %v53
  %v55 = vadd.f32 %v52, %v35
  %v56 = vmul.f32 %v35, %v35
  %v57 = vadd.f32 %v54, %v56
  %v58 = vadd.f32 %v55, %v36
  %v59 = vmul.f32 %v36, %v36
  %v60 = vadd.f32 %v57, %v59
  %61 = vst [vmem:[%s2] sm:$0xff] %v58
  %62 = vst [vmem:[%s3] sm:$0xff] %v60
  // Predicated region
  $region10: #{std_dev_loss.1} parent=0 // pred_check
    _
  $region11: #{std_dev_loss.1} parent=0 // pred_check_branch
    %64 = sbr.rel (0) target = $region13
  $region12: #{std_dev_loss.1} parent=0 // pred_region
    _
  $region13: #{std_dev_loss.1} parent=0 // pred_fallthru
    _
  // Predicated region
  $region14: #{std_dev_loss.1} parent=0 // pred_check
    _
  $region15: #{std_dev_loss.1} parent=0 // pred_check_branch
    %66 = sbr.rel (0) target = $region17
  $region16: #{std_dev_loss.1} parent=0 // pred_region
    _
  $region17: #{std_dev_loss.1} parent=0 // pred_fallthru
    _
  // Predicated region
  $region18: #{std_dev_loss.1} parent=0 // pred_check
    _
  $region19: #{std_dev_loss.1} parent=0 // pred_check_branch
    %68 = sbr.rel (0) target = $region21
  $region20: #{std_dev_loss.1} parent=0 // pred_region
    _
  $region21: #{std_dev_loss.1} parent=0 // pred_fallthru
    _
  // Predicated region
  $region22: #{std_dev_loss.1} parent=0 // pred_check
    _
  $region23: #{std_dev_loss.1} parent=0 // pred_check_branch
    %70 = sbr.rel (0) target = $region25
  $region24: #{std_dev_loss.1} parent=0 // pred_region
    _
  $region25: #{std_dev_loss.1} parent=0 // pred_fallthru
    _

</llo_original>
